<compile_context>
chip_gen: v7x
topology: tpu7x:2x2x1
jax: 0.10.0
libtpu: 0.0.40
codegen_flags: <defaults>
</compile_context>

<pallas_src>
import jax
import jax.numpy as jnp
import numpy as np
from jax.experimental import pallas as pl
from jax.experimental.pallas import tpu as pltpu


def _round_up(a: int, b: int) -> int:
    return ((a + b - 1) // b) * b


# ----------------------------------------------------------------------------
# Pallas kernel: one row tile of fused Linear(D -> 1) + sigmoid + mask
# ----------------------------------------------------------------------------
def classifier_kernel(x_ref, mask_ref, w_ref, b_ref, out_ref):
    # x_ref:    (TILE_ROWS, D_pad)   hidden-state tile (native dtype)
    # mask_ref: (1, 1, TILE_ROWS)    lane-dense f32 sentence mask tile
    # w_ref:    (8, D_pad)           f32 Linear weight; row 0 real, rows 1-7 zero
    #                                (constant index_map -> VMEM-resident)
    # b_ref:    (1, 1)  in SMEM      f32 bias scalar
    # out_ref:  (1, 1, TILE_ROWS)    lane-dense f32 sentence scores
    x = x_ref[...].astype(jnp.float32)                     # per-tile upcast (v5e-safe)

    # (8, D) x (TILE_ROWS, D)^T -> (8, TILE_ROWS): transposed-RHS contraction puts
    # the per-row projection lane-dense directly (no relayout). Only row 0 is real.
    h = jax.lax.dot_general(
        w_ref[...], x,
        dimension_numbers=(((1,), (1,)), ((), ())),
        preferred_element_type=jnp.float32)
    h = h[0:1, :] + b_ref[0, 0]                            # (1, TILE_ROWS)

    scores = 1.0 / (1.0 + jnp.exp(-h))                     # sigmoid; exp lands on EUP
    out_ref[0] = scores * mask_ref[0]                      # lane-dense store


# ----------------------------------------------------------------------------
# Wrapper
# ----------------------------------------------------------------------------
def classifier_forward(x, mask_cls, weight, bias):
    """x: (B, S, D) float (any), mask_cls: (B, S), weight: (1, D), bias: (1,)."""
    B, S, D = x.shape
    n_rows = B * S

    # Lane-pad the feature dim; zero-padding both x and W keeps the dot exact.
    d_pad = _round_up(D, 128)

    # Row tile: lane-dense multiple of 128, sized so the double-buffered x
    # stream stays <= ~8 MiB (fits every generation's scoped-VMEM default).
    itemsize = x.dtype.itemsize
    budget_rows = (8 * 1024 * 1024) // (2 * d_pad * itemsize)
    tile_rows = max(128, min(1024, (budget_rows // 128) * 128))
    tile_rows = min(tile_rows, _round_up(n_rows, 128))

    n_pad = _round_up(n_rows, tile_rows)
    num_tiles = n_pad // tile_rows

    # Stream x in its native dtype (no wrapper-side f32 cast).
    x_flat = x.reshape(n_rows, D)
    if n_pad != n_rows or d_pad != D:
        x_flat = jnp.pad(x_flat, ((0, n_pad - n_rows), (0, d_pad - D)))

    mask_flat = mask_cls.astype(jnp.float32).reshape(n_rows)
    if n_pad != n_rows:
        mask_flat = jnp.pad(mask_flat, (0, n_pad - n_rows))
    mask_tiled = mask_flat.reshape(num_tiles, 1, tile_rows)          # lane-dense

    w = weight.reshape(1, D).astype(jnp.float32)
    w = jnp.pad(w, ((0, 7), (0, d_pad - D)))                         # (8, d_pad)
    b = bias.reshape(1, 1).astype(jnp.float32)

    out = pl.pallas_call(
        classifier_kernel,
        out_shape=jax.ShapeDtypeStruct((num_tiles, 1, tile_rows), jnp.float32),
        grid=(num_tiles,),
        in_specs=[
            pl.BlockSpec((tile_rows, d_pad), lambda i: (i, 0)),      # x row tile
            pl.BlockSpec((1, 1, tile_rows), lambda i: (i, 0, 0)),    # mask tile
            pl.BlockSpec((8, d_pad), lambda i: (0, 0)),              # weight (resident)
            pl.BlockSpec(memory_space=pltpu.MemorySpace.SMEM),       # bias scalar
        ],
        out_specs=pl.BlockSpec((1, 1, tile_rows), lambda i: (i, 0, 0)),
        compiler_params=pltpu.CompilerParams(
            dimension_semantics=("parallel",)),
    )(x_flat, mask_tiled, w, b)

    return out.reshape(n_pad)[:n_rows].reshape(B, S)


# ----------------------------------------------------------------------------
# Pure-JAX reference (exact PyTorch semantics)
# ----------------------------------------------------------------------------
def reference_forward(x, mask_cls, weight, bias):
    h = jnp.einsum('bsd,od->bso', x.astype(jnp.float32),
                   weight.astype(jnp.float32))[..., 0] + bias[0]      # Linear + squeeze
    return jax.nn.sigmoid(h) * mask_cls.astype(jnp.float32)


if __name__ == "__main__":
    B, S, HIDDEN = 2, 8, 32
    key = jax.random.PRNGKey(0)
    kx, kw, kb = jax.random.split(key, 3)

    # Round x / W onto the bf16 grid so the check is insensitive to the MXU's
    # f32-matmul pass decomposition (all products are then exact in f32).
    x = jax.random.normal(kx, (B, S, HIDDEN), jnp.float32)
    x = x.astype(jnp.bfloat16).astype(jnp.float32)
    weight = (jax.random.normal(kw, (1, HIDDEN), jnp.float32) * 0.02)
    weight = weight.astype(jnp.bfloat16).astype(jnp.float32)
    bias = jax.random.normal(kb, (1,), dtype=jnp.float32) * 0.02
    mask_cls = jnp.array([[1, 1, 1, 1, 1, 1, 1, 1],
                          [1, 1, 1, 1, 1, 0, 0, 0]], dtype=jnp.int32)

    out = jax.block_until_ready(classifier_forward(x, mask_cls, weight, bias))
    ref = jax.block_until_ready(reference_forward(x, mask_cls, weight, bias))
    np.testing.assert_allclose(np.asarray(out), np.asarray(ref), rtol=1e-5, atol=1e-5)

    print("KERNEL_OK")
</pallas_src>

<mosaic_0001>
module attributes {stable_mosaic.version = 11 : i64} {
  func.func @classifier_kernel(%arg0: i32, %arg1: memref<128x128xf32, #tpu.memory_space<vmem>>, %arg2: memref<1x1x128xf32, #tpu.memory_space<vmem>>, %arg3: memref<8x128xf32, #tpu.memory_space<vmem>>, %arg4: memref<1x1xf32, #tpu.memory_space<smem>>, %arg5: memref<1x1x128xf32, #tpu.memory_space<vmem>>) attributes {dimension_semantics = [#tpu.dimension_semantics<parallel>], iteration_bounds = array<i64: 1>, scalar_prefetch = 0 : i64, scratch_operands = 0 : i64, tpu.core_type = #tpu.core_type<tc>, window_params = [{transform_indices = @transform_0, window_bounds = array<i64: 128, 128>}, {transform_indices = @transform_1, window_bounds = array<i64: 1, 1, 128>}, {pipeline_mode = #tpu.pipeline_mode<synchronous>, transform_indices = @transform_2, window_bounds = array<i64: 8, 128>}, {transform_indices = @transform_3, window_bounds = array<i64: 1, 1>}, {transform_indices = @transform_4, window_bounds = array<i64: 1, 1, 128>}]} {
    %c0 = arith.constant 0 : index
    %c0_0 = arith.constant 0 : index
    %0 = vector.load %arg1[%c0, %c0_0] : memref<128x128xf32, #tpu.memory_space<vmem>>, vector<128x128xf32>
    %c0_1 = arith.constant 0 : index
    %c0_2 = arith.constant 0 : index
    %1 = vector.load %arg3[%c0_1, %c0_2] : memref<8x128xf32, #tpu.memory_space<vmem>>, vector<8x128xf32>
    %cst = arith.constant dense<0.000000e+00> : vector<8x128xf32>
    %2 = tpu.matmul %1, %0, %cst {dimension_numbers = #tpu.dot_dimension_numbers<[1], [1], [0], [0], [0, 0, 1, 0], [], []>} : vector<8x128xf32>, vector<128x128xf32>, vector<8x128xf32> -> vector<8x128xf32>
    %3 = vector.extract_strided_slice %2 {offsets = [0, 0], sizes = [1, 128], strides = [1, 1]} : vector<8x128xf32> to vector<1x128xf32>
    %c0_3 = arith.constant 0 : index
    %c0_4 = arith.constant 0 : index
    %4 = memref.load %arg4[%c0_3, %c0_4] : memref<1x1xf32, #tpu.memory_space<smem>>
    %5 = vector.broadcast %4 : f32 to vector<1x128xf32>
    %6 = arith.addf %3, %5 : vector<1x128xf32>
    %cst_5 = arith.constant 0.000000e+00 : f32
    %7 = vector.broadcast %cst_5 : f32 to vector<1x128xf32>
    %8 = arith.subf %7, %6 : vector<1x128xf32>
    %9 = math.exp %8 : vector<1x128xf32>
    %cst_6 = arith.constant 1.000000e+00 : f32
    %10 = vector.broadcast %cst_6 : f32 to vector<1x128xf32>
    %11 = arith.addf %10, %9 : vector<1x128xf32>
    %cst_7 = arith.constant 1.000000e+00 : f32
    %12 = vector.broadcast %cst_7 : f32 to vector<1x128xf32>
    %13 = arith.divf %12, %11 : vector<1x128xf32>
    %c0_8 = arith.constant 0 : index
    %c0_9 = arith.constant 0 : index
    %c0_10 = arith.constant 0 : index
    %14 = vector.load %arg2[%c0_8, %c0_9, %c0_10] : memref<1x1x128xf32, #tpu.memory_space<vmem>>, vector<1x1x128xf32>
    %15 = vector.shape_cast %14 : vector<1x1x128xf32> to vector<1x128xf32>
    %16 = arith.mulf %13, %15 : vector<1x128xf32>
    %c0_11 = arith.constant 0 : index
    %c0_12 = arith.constant 0 : index
    %c0_13 = arith.constant 0 : index
    %17 = vector.load %arg5[%c0_11, %c0_12, %c0_13] : memref<1x1x128xf32, #tpu.memory_space<vmem>>, vector<1x1x128xf32>
    %18 = vector.shape_cast %17 : vector<1x1x128xf32> to vector<1x128xf32>
    %19 = vector.shape_cast %16 : vector<1x128xf32> to vector<1x1x128xf32>
    tpu.vector_store %arg5[%c0_11, %c0_12, %c0_13], %19 {strides = array<i32>} : memref<1x1x128xf32, #tpu.memory_space<vmem>>, vector<1x1x128xf32>,
    return
  }
  func.func @transform_0(%arg0: i32) -> (i32, i32) {
    %c0_i32 = arith.constant 0 : i32
    %c0_i32_0 = arith.constant 0 : i32
    return %arg0, %c0_i32 : i32, i32
  }
  func.func @transform_1(%arg0: i32) -> (i32, i32, i32) {
    %c0_i32 = arith.constant 0 : i32
    %c0_i32_0 = arith.constant 0 : i32
    %c0_i32_1 = arith.constant 0 : i32
    return %arg0, %c0_i32, %c0_i32_0 : i32, i32, i32
  }
  func.func @transform_2(%arg0: i32) -> (i32, i32) {
    %c0_i32 = arith.constant 0 : i32
    %c0_i32_0 = arith.constant 0 : i32
    %c0_i32_1 = arith.constant 0 : i32
    return %c0_i32, %c0_i32_0 : i32, i32
  }
  func.func @transform_3(%arg0: i32) -> (i32, i32) {
    %c0_i32 = arith.constant 0 : i32
    %c0_i32_0 = arith.constant 0 : i32
    %c0_i32_1 = arith.constant 0 : i32
    return %c0_i32, %c0_i32_0 : i32, i32
  }
  func.func @transform_4(%arg0: i32) -> (i32, i32, i32) {
    %c0_i32 = arith.constant 0 : i32
    %c0_i32_0 = arith.constant 0 : i32
    %c0_i32_1 = arith.constant 0 : i32
    return %arg0, %c0_i32, %c0_i32_0 : i32, i32, i32
  }
}

</mosaic_0001>

<llo_original>
// kernel: tpu_custom_call.1
$region0: #{tpu_custom_call.1}
  #allocation0 [shape = 'u32[]', space=smem, size = 0x4, offset = 0x4, fixed_abs, tag = 'smem constant byte address 0x4 - core index']
  #allocation1 [shape = 'u32[144,128]{1,0:T(1,128)}', space=vmem, size = 0x12000, scoped, tag = 'internal scratch']
  #allocation2 [shape = 'f32[1,1]{1,0:T(1,128)S(6)}', space=smem, size = 0x200, scoped, tag = 'scoped memory for tpu_custom_call.1']
  %s0 = inlined_call_operand.hbm [shape: f32[128,128], index: 0, kind: input, shape index: {}]
  %s1 = inlined_call_operand.vmem [shape: f32[1,1,128], index: 1, kind: input, shape index: {}]
  %s2 = inlined_call_operand.vmem [shape: f32[8,128], index: 2, kind: input, shape index: {}]
  %s3 = inlined_call_operand.<no memory space> [shape: f32[1,1], index: 3, kind: input, shape index: {}]
  %s4 = inlined_call_operand.hbm [shape: f32[1,1,128], index: 4, kind: output, shape index: {}]
  %s5 = sld [smem:[#allocation0]]
  $region30: #{tpu_custom_call.1} parent=0
    _
  %s7 = ssub.s32 1, %s5
  %s8 = scalar_select 0, %s7, %s5
  %9 = sst [smem:[#allocation2]] %s3
  $region1: #{tpu_custom_call.1} parent=0
    #allocation3 [shape = 'u8[65536]{0}', space=vmem, size = 0x10000, scoped, tag = 'input window, operand 0, single buffered']
    #allocation4 [shape = 's32[1]{0}', space=sflag, size = 0x4, scoped, tag = 'scoped memory for tpu_custom_call.1']
    #allocation5 [shape = 's32[1]{0}', space=sflag, size = 0x4, scoped, tag = 'scoped memory for tpu_custom_call.1']
    #allocation6 [shape = 'u8[512]{0}', space=vmem, size = 0x400, scoped, tag = 'output window, operand 0, single buffered']
    %10 = vsyncpa [#allocation4], 0
    %11 = vsyncpa [#allocation5], 0
    // Predicated region
    $region2: #{tpu_custom_call.1} parent=1 // pred_check
      _
    $region3: #{tpu_custom_call.1} parent=1 // pred_check_branch
      %13 = sbr.rel (0) target = $region5
    $region4: #{tpu_custom_call.1} parent=1 // pred_region
      %s15 = ssub.s32 2048, 2048
      %16 = vsyncadd [#allocation4], %s15
      %s17 = sshll.u32 [#allocation3], 4
      %s18 = int_to_ptr.vmem [resolvable:$true] %s17
      %23 = dma.hbm_to_vmem [thread:$0]  %s0, 2048, %s18, [#allocation4], 128, 128, 8
    $region5: #{tpu_custom_call.1} parent=1 // pred_fallthru
      _
    // Predicated region
    $region6: #{tpu_custom_call.1} parent=1 // pred_check
      _
    $region7: #{tpu_custom_call.1} parent=1 // pred_check_branch
      %25 = sbr.rel (0) target = $region9
    $region8: #{tpu_custom_call.1} parent=1 // pred_region
      _
    $region9: #{tpu_custom_call.1} parent=1 // pred_fallthru
      _
    // Predicated region
    $region10: #{tpu_custom_call.1} parent=1 // pred_check
      _
    $region11: #{tpu_custom_call.1} parent=1 // pred_check_branch
      %27 = sbr.rel (0) target = $region13
    $region12: #{tpu_custom_call.1} parent=1 // pred_region
      _
    $region13: #{tpu_custom_call.1} parent=1 // pred_fallthru
      _
    // Predicated region
    $region14: #{tpu_custom_call.1} parent=1 // pred_check
      _
    $region15: #{tpu_custom_call.1} parent=1 // pred_check_branch
      %29 = sbr.rel (0) target = $region17
    $region16: #{tpu_custom_call.1} parent=1 // pred_region
      _
    $region17: #{tpu_custom_call.1} parent=1 // pred_fallthru
      _
    // Predicated region
    $region18: #{tpu_custom_call.1} parent=1 // pred_check
      _
    $region19: #{tpu_custom_call.1} parent=1 // pred_check_branch
      %31 = sbr.rel (0) target = $region21
    $region20: #{tpu_custom_call.1} parent=1 // pred_region
      %32 = dma.done [#allocation4], 2048
    $region21: #{tpu_custom_call.1} parent=1 // pred_fallthru
      _
    %v33 = vld [vmem:[#allocation3] sm:$0xff]
    %v34 = vld [vmem:[#allocation3 + $0x8] sm:$0xff]
    %v35 = vld [vmem:[#allocation3 + $0x10] sm:$0xff]
    %v36 = vld [vmem:[#allocation3 + $0x18] sm:$0xff]
    %v37 = vld [vmem:[#allocation3 + $0x20] sm:$0xff]
    %v38 = vld [vmem:[#allocation3 + $0x28] sm:$0xff]
    %v39 = vld [vmem:[#allocation3 + $0x30] sm:$0xff]
    %v40 = vld [vmem:[#allocation3 + $0x38] sm:$0xff]
    %v41 = vld [vmem:[#allocation3 + $0x40] sm:$0xff]
    %v42 = vld [vmem:[#allocation3 + $0x48] sm:$0xff]
    %v43 = vld [vmem:[#allocation3 + $0x50] sm:$0xff]
    %v44 = vld [vmem:[#allocation3 + $0x58] sm:$0xff]
    %v45 = vld [vmem:[#allocation3 + $0x60] sm:$0xff]
    %v46 = vld [vmem:[#allocation3 + $0x68] sm:$0xff]
    %v47 = vld [vmem:[#allocation3 + $0x70] sm:$0xff]
    %v48 = vld [vmem:[#allocation3 + $0x78] sm:$0xff]
    %v49 = vld [vmem:[%s2] sm:$0xff]
    %50 = vmatprep.subr.mxu0 0.0
    %51 = vmatpush1.xpose.msra.mxu0 %v33
    %52 = vmatprep.subr.mxu0 0.0
    %53 = vmatpush1.xpose.msra.mxu0 %v34
    %54 = vmatprep.subr.mxu0 0.0
    %55 = vmatpush1.xpose.msra.mxu0 %v35
    %56 = vmatprep.subr.mxu0 0.0
    %57 = vmatpush1.xpose.msra.mxu0 %v36
    %58 = vmatprep.subr.mxu0 0.0
    %59 = vmatpush1.xpose.msra.mxu0 %v37
    %60 = vmatprep.subr.mxu0 0.0
    %61 = vmatpush1.xpose.msra.mxu0 %v38
    %62 = vmatprep.subr.mxu0 0.0
    %63 = vmatpush1.xpose.msra.mxu0 %v39
    %64 = vmatprep.subr.mxu0 0.0
    %65 = vmatpush1.xpose.msra.mxu0 %v40
    %66 = vmatprep.subr.mxu0 0.0
    %67 = vmatpush1.xpose.msra.mxu0 %v41
    %68 = vmatprep.subr.mxu0 0.0
    %69 = vmatpush1.xpose.msra.mxu0 %v42
    %70 = vmatprep.subr.mxu0 0.0
    %71 = vmatpush1.xpose.msra.mxu0 %v43
    %72 = vmatprep.subr.mxu0 0.0
    %73 = vmatpush1.xpose.msra.mxu0 %v44
    %74 = vmatprep.subr.mxu0 0.0
    %75 = vmatpush1.xpose.msra.mxu0 %v45
    %76 = vmatprep.subr.mxu0 0.0
    %77 = vmatpush1.xpose.msra.mxu0 %v46
    %78 = vmatprep.subr.mxu0 0.0
    %79 = vmatpush1.xpose.msra.mxu0 %v47
    %80 = vmatprep.subr.mxu0 0.0
    %81 = vmatpush1.xpose.msra.mxu0 %v48
    %82 = vmatprep.subr.mxu0 0.0
    %83 = vmatpush1.xpose.msra.mxu0 0.0
    %84 = vmatprep.subr.mxu0 0.0
    %85 = vmatpush1.xpose.msra.mxu0 0.0
    %86 = vmatprep.subr.mxu0 0.0
    %87 = vmatpush1.xpose.msra.mxu0 0.0
    %88 = vmatprep.subr.mxu0 0.0
    %89 = vmatpush1.xpose.msra.mxu0 0.0
    %90 = vmatprep.subr.mxu0 0.0
    %91 = vmatpush1.xpose.msra.mxu0 0.0
    %92 = vmatprep.subr.mxu0 0.0
    %93 = vmatpush1.xpose.msra.mxu0 0.0
    %94 = vmatprep.subr.mxu0 0.0
    %95 = vmatpush1.xpose.msra.mxu0 0.0
    %96 = vmatprep.subr.mxu0 0.0
    %97 = vmatpush1.xpose.msra.mxu0 0.0
    %98 = vmatprep.subr.mxu0 0.0
    %99 = vmatpush1.xpose.msra.mxu0 0.0
    %100 = vmatprep.subr.mxu0 0.0
    %101 = vmatpush1.xpose.msra.mxu0 0.0
    %102 = vmatprep.subr.mxu0 0.0
    %103 = vmatpush1.xpose.msra.mxu0 0.0
    %104 = vmatprep.subr.mxu0 0.0
    %105 = vmatpush1.xpose.msra.mxu0 0.0
    %106 = vmatprep.subr.mxu0 0.0
    %107 = vmatpush1.xpose.msra.mxu0 0.0
    %108 = vmatprep.subr.mxu0 0.0
    %109 = vmatpush1.xpose.msra.mxu0 0.0
    %110 = vmatprep.subr.mxu0 0.0
    %111 = vmatpush1.xpose.msra.mxu0 0.0
    %112 = vmatprep.subr.mxu0 0.0
    %113 = vmatpush1.xpose.msra.mxu0 0.0
    %114 = vmatprep.mubr.f32.mxu0 0.0
    %115 = vmatmul.mubr.f32.gmra.mrb[0].mxu0 %v49
    %v116 = vpop.f32.mrb[0].mxu0
    %v117 = vadd.f32 0.0, %v116
    %v118 = vpop.f32.mrb[0].mxu0
    %119 = vdwg.mxu0
    %s120 = sld [smem:[#allocation2]]
    %v121 = vstv %s120
    %v122 = vadd.f32 %v117, %v121
    %v123 = vsub.f32 0.0, %v122
    %v124 = vmul.f32 %v123, 1.442695
    %v125 = vpow.pop %v124
    %v126 = vadd.f32 %v125, 1.0
    %v127 = vrcp.pop %v126
    %v128 = vmul.f32 1.0, %v127
    %v129 = vld [vmem:[%s1] sm:$0x1]
    %v130 = vmul.f32 %v128, %v129
    %131 = vst [vmem:[#allocation6] sm:$0x1] %v130
    // Predicated region
    $region22: #{tpu_custom_call.1} parent=1 // pred_check
      _
    $region23: #{tpu_custom_call.1} parent=1 // pred_check_branch
      %133 = sbr.rel (0) target = $region25
    $region24: #{tpu_custom_call.1} parent=1 // pred_region
      %s135 = ssub.s32 16, 16
      %136 = vsyncadd [#allocation5], %s135
      %s138 = sshll.u32 [#allocation6], 4
      %s139 = int_to_ptr.vmem [resolvable:$true] %s138
      %141 = dma.vmem_to_hbm [thread:$0]  %s139, 16, %s4, [#allocation5]
    $region25: #{tpu_custom_call.1} parent=1 // pred_fallthru
      _
    // Predicated region
    $region26: #{tpu_custom_call.1} parent=1 // pred_check
      _
    $region27: #{tpu_custom_call.1} parent=1 // pred_check_branch
      %143 = sbr.rel (0) target = $region29
    $region28: #{tpu_custom_call.1} parent=1 // pred_region
      %144 = dma.done [#allocation5], 16
    $region29: #{tpu_custom_call.1} parent=1 // pred_fallthru
      _
    %145 = vsyncpa [#allocation4], 1
    %146 = vsyncpa [#allocation5], 1

</llo_original>
